<compile_context>
chip_gen: v7x
topology: tpu7x:2x2x1
jax: 0.10.0
libtpu: 0.0.40
codegen_flags: <defaults>
</compile_context>

<pallas_src>
import jax
import jax.numpy as jnp
from jax.experimental import pallas as pl
from jax.experimental.pallas import tpu as pltpu


def _round_up(n, m):
    return ((n + m - 1) // m) * m


def ffnet_kernel(x_ref, w1_ref, b1_ref, w2_ref, b2_ref, o_ref):
    """One fully-occupied batch tile of  y = fc2(sigmoid(fc1(x))).

    Layout (batch packed onto sublanes x lanes):
      x_ref : (2, S, 128) f32 VMEM     -- feature-major, batch on (sublane, lane)
      w1_ref: (4, 2) f32 SMEM          -- fc1 weight
      b1_ref: (4,)   f32 SMEM          -- fc1 bias
      w2_ref: (4,)   f32 SMEM          -- fc2 weight
      b2_ref: (1,)   f32 SMEM          -- fc2 bias
      o_ref : (S, 128) f32 VMEM
    All contractions are scalar x vreg VPU FMAs (no MXU, no XLU reduce).
    """
    x0 = x_ref[0]                                      # (S, 128)
    x1 = x_ref[1]                                      # (S, 128)

    acc = jnp.full(x0.shape, b2_ref[0], x0.dtype)      # start from fc2 bias
    for j in range(4):  # static unroll over the 4 hidden units
        h = jax.nn.sigmoid(w1_ref[j, 0] * x0 + w1_ref[j, 1] * x1 + b1_ref[j])
        acc = acc + w2_ref[j] * h                      # fc2 accumulate (VALU)

    o_ref[...] = acc.astype(o_ref.dtype)


def simple_ffnet_forward(x, w1, b1, w2, b2, *, tb=131072):
    """x: (B, 2).  w1: (4, 2), b1: (4,), w2: (1, 4), b2: (1,) — PyTorch layout.

    Returns y: (B, 1) float32.  `tb` = batch lanes per grid step (sweepable,
    must give a sublane tile S = tb//128 that is a multiple of 8).
    """
    B = x.shape[0]
    g_needed = -(-B // 128)                       # sublane rows holding the batch
    s_max = max(8, (tb // 128) // 8 * 8)          # tile sublane rows, multiple of 8
    S = min(s_max, _round_up(g_needed, 8))
    G = _round_up(g_needed, S)                    # total sublane rows (padded)
    B_pad = G * 128
    grid = (G // S,)

    # Pack the batch onto (sublane, lane): (B, 2) -> (2, G, 128), zero tail.
    xT = jnp.zeros((2, B_pad), jnp.float32).at[:, :B].set(x.T.astype(jnp.float32))
    xP = xT.reshape(2, G, 128)

    # Tiny parameters -> SMEM, used as scalar operands in the kernel.
    w1_c = w1.astype(jnp.float32)                 # (4, 2)
    b1_c = b1.reshape(4).astype(jnp.float32)      # (4,)
    w2_c = w2.reshape(4).astype(jnp.float32)      # (4,)
    b2_c = b2.reshape(1).astype(jnp.float32)      # (1,)

    smem = pl.BlockSpec(memory_space=pltpu.MemorySpace.SMEM)

    yP = pl.pallas_call(
        ffnet_kernel,
        out_shape=jax.ShapeDtypeStruct((G, 128), jnp.float32),  # pinned f32
        grid=grid,
        in_specs=[
            pl.BlockSpec((2, S, 128), lambda i: (0, i, 0)),  # x tile, auto double-buffered
            smem, smem, smem, smem,
        ],
        out_specs=pl.BlockSpec((S, 128), lambda i: (i, 0)),
        compiler_params=pltpu.CompilerParams(
            dimension_semantics=("parallel",)),   # megacore sharding on v7x
    )(xP, w1_c, b1_c, w2_c, b2_c)

    return yP.reshape(B_pad)[:B].reshape(B, 1)


def _torch_linear_init(key, out_features, in_features):
    """Deterministic stand-in for nn.Linear's default init: U(-k, k), k=1/sqrt(fan_in)."""
    k = 1.0 / jnp.sqrt(jnp.float32(in_features))
    kw, kb = jax.random.split(key)
    w = jax.random.uniform(kw, (out_features, in_features), jnp.float32, -k, k)
    b = jax.random.uniform(kb, (out_features,), jnp.float32, -k, k)
    return w, b


if __name__ == "__main__":
    key = jax.random.PRNGKey(0)
    k_x, k_fc1, k_fc2 = jax.random.split(key, 3)

    w1, b1 = _torch_linear_init(k_fc1, 4, 2)   # fc1: Linear(2, 4)
    w2, b2 = _torch_linear_init(k_fc2, 1, 4)   # fc2: Linear(4, 1)

    def ref_fwd(xx):
        return jax.nn.sigmoid(xx @ w1.T + b1) @ w2.T + b2

    # Small batch (single tile, grid=(1,)) — matches the original XOR-style use.
    B = 8
    x_small = jax.random.normal(k_x, (B, 2), jnp.float32)
    out_small = jax.block_until_ready(simple_ffnet_forward(x_small, w1, b1, w2, b2))
    assert out_small.shape == (B, 1)
    assert jnp.allclose(out_small, ref_fwd(x_small), atol=1e-5), "mismatch (small batch)"

    # Ragged batch with a multi-step grid (tb=1024 lanes -> S=8, grid=(3,)) to
    # exercise pipelining and the zero-padded tail path.
    x_big = jax.random.normal(k_x, (3000, 2), jnp.float32)
    out_big = jax.block_until_ready(
        simple_ffnet_forward(x_big, w1, b1, w2, b2, tb=1024))
    assert out_big.shape == (3000, 1)
    assert jnp.allclose(out_big, ref_fwd(x_big), atol=1e-5), "mismatch (multi-tile batch)"

    print("KERNEL_OK")
</pallas_src>

<mosaic_0001>
module attributes {stable_mosaic.version = 11 : i64} {
  func.func @ffnet_kernel(%arg0: i32, %arg1: memref<2x8x128xf32, #tpu.memory_space<vmem>>, %arg2: memref<4x2xf32, #tpu.memory_space<smem>>, %arg3: memref<4xf32, #tpu.memory_space<smem>>, %arg4: memref<4xf32, #tpu.memory_space<smem>>, %arg5: memref<1xf32, #tpu.memory_space<smem>>, %arg6: memref<8x128xf32, #tpu.memory_space<vmem>>) attributes {dimension_semantics = [#tpu.dimension_semantics<parallel>], iteration_bounds = array<i64: 1>, scalar_prefetch = 0 : i64, scratch_operands = 0 : i64, tpu.core_type = #tpu.core_type<tc>, window_params = [{transform_indices = @transform_0, window_bounds = array<i64: 2, 8, 128>}, {transform_indices = @transform_1, window_bounds = array<i64: 4, 2>}, {transform_indices = @transform_2, window_bounds = array<i64: 4>}, {transform_indices = @transform_3, window_bounds = array<i64: 4>}, {transform_indices = @transform_4, window_bounds = array<i64: 1>}, {transform_indices = @transform_5, window_bounds = array<i64: 8, 128>}]} {
    %c0 = arith.constant 0 : index
    %c0_0 = arith.constant 0 : index
    %c0_1 = arith.constant 0 : index
    %0 = vector.load %arg1[%c0, %c0_0, %c0_1] : memref<2x8x128xf32, #tpu.memory_space<vmem>>, vector<1x8x128xf32>
    %1 = vector.shape_cast %0 : vector<1x8x128xf32> to vector<8x128xf32>
    %c1 = arith.constant 1 : index
    %c0_2 = arith.constant 0 : index
    %c0_3 = arith.constant 0 : index
    %2 = vector.load %arg1[%c1, %c0_2, %c0_3] : memref<2x8x128xf32, #tpu.memory_space<vmem>>, vector<1x8x128xf32>
    %3 = vector.shape_cast %2 : vector<1x8x128xf32> to vector<8x128xf32>
    %c0_4 = arith.constant 0 : index
    %4 = memref.load %arg5[%c0_4] : memref<1xf32, #tpu.memory_space<smem>>
    %5 = vector.broadcast %4 : f32 to vector<8x128xf32>
    %c0_5 = arith.constant 0 : index
    %c0_6 = arith.constant 0 : index
    %6 = memref.load %arg2[%c0_5, %c0_6] : memref<4x2xf32, #tpu.memory_space<smem>>
    %7 = vector.broadcast %6 : f32 to vector<8x128xf32>
    %8 = arith.mulf %7, %1 : vector<8x128xf32>
    %c0_7 = arith.constant 0 : index
    %c1_8 = arith.constant 1 : index
    %9 = memref.load %arg2[%c0_7, %c1_8] : memref<4x2xf32, #tpu.memory_space<smem>>
    %10 = vector.broadcast %9 : f32 to vector<8x128xf32>
    %11 = arith.mulf %10, %3 : vector<8x128xf32>
    %12 = arith.addf %8, %11 : vector<8x128xf32>
    %c0_9 = arith.constant 0 : index
    %13 = memref.load %arg3[%c0_9] : memref<4xf32, #tpu.memory_space<smem>>
    %14 = vector.broadcast %13 : f32 to vector<8x128xf32>
    %15 = arith.addf %12, %14 : vector<8x128xf32>
    %16 = arith.negf %15 : vector<8x128xf32>
    %17 = math.exp %16 : vector<8x128xf32>
    %cst = arith.constant 1.000000e+00 : f32
    %18 = vector.broadcast %cst : f32 to vector<8x128xf32>
    %19 = arith.addf %18, %17 : vector<8x128xf32>
    %20 = arith.divf %18, %19 : vector<8x128xf32>
    %c0_10 = arith.constant 0 : index
    %21 = memref.load %arg4[%c0_10] : memref<4xf32, #tpu.memory_space<smem>>
    %22 = vector.broadcast %21 : f32 to vector<8x128xf32>
    %23 = arith.mulf %22, %20 : vector<8x128xf32>
    %24 = arith.addf %5, %23 : vector<8x128xf32>
    %c1_11 = arith.constant 1 : index
    %c0_12 = arith.constant 0 : index
    %25 = memref.load %arg2[%c1_11, %c0_12] : memref<4x2xf32, #tpu.memory_space<smem>>
    %26 = vector.broadcast %25 : f32 to vector<8x128xf32>
    %27 = arith.mulf %26, %1 : vector<8x128xf32>
    %c1_13 = arith.constant 1 : index
    %c1_14 = arith.constant 1 : index
    %28 = memref.load %arg2[%c1_13, %c1_14] : memref<4x2xf32, #tpu.memory_space<smem>>
    %29 = vector.broadcast %28 : f32 to vector<8x128xf32>
    %30 = arith.mulf %29, %3 : vector<8x128xf32>
    %31 = arith.addf %27, %30 : vector<8x128xf32>
    %c1_15 = arith.constant 1 : index
    %32 = memref.load %arg3[%c1_15] : memref<4xf32, #tpu.memory_space<smem>>
    %33 = vector.broadcast %32 : f32 to vector<8x128xf32>
    %34 = arith.addf %31, %33 : vector<8x128xf32>
    %35 = arith.negf %34 : vector<8x128xf32>
    %36 = math.exp %35 : vector<8x128xf32>
    %cst_16 = arith.constant 1.000000e+00 : f32
    %37 = vector.broadcast %cst_16 : f32 to vector<8x128xf32>
    %38 = arith.addf %37, %36 : vector<8x128xf32>
    %39 = arith.divf %37, %38 : vector<8x128xf32>
    %c1_17 = arith.constant 1 : index
    %40 = memref.load %arg4[%c1_17] : memref<4xf32, #tpu.memory_space<smem>>
    %41 = vector.broadcast %40 : f32 to vector<8x128xf32>
    %42 = arith.mulf %41, %39 : vector<8x128xf32>
    %43 = arith.addf %24, %42 : vector<8x128xf32>
    %c2 = arith.constant 2 : index
    %c0_18 = arith.constant 0 : index
    %44 = memref.load %arg2[%c2, %c0_18] : memref<4x2xf32, #tpu.memory_space<smem>>
    %45 = vector.broadcast %44 : f32 to vector<8x128xf32>
    %46 = arith.mulf %45, %1 : vector<8x128xf32>
    %c2_19 = arith.constant 2 : index
    %c1_20 = arith.constant 1 : index
    %47 = memref.load %arg2[%c2_19, %c1_20] : memref<4x2xf32, #tpu.memory_space<smem>>
    %48 = vector.broadcast %47 : f32 to vector<8x128xf32>
    %49 = arith.mulf %48, %3 : vector<8x128xf32>
    %50 = arith.addf %46, %49 : vector<8x128xf32>
    %c2_21 = arith.constant 2 : index
    %51 = memref.load %arg3[%c2_21] : memref<4xf32, #tpu.memory_space<smem>>
    %52 = vector.broadcast %51 : f32 to vector<8x128xf32>
    %53 = arith.addf %50, %52 : vector<8x128xf32>
    %54 = arith.negf %53 : vector<8x128xf32>
    %55 = math.exp %54 : vector<8x128xf32>
    %cst_22 = arith.constant 1.000000e+00 : f32
    %56 = vector.broadcast %cst_22 : f32 to vector<8x128xf32>
    %57 = arith.addf %56, %55 : vector<8x128xf32>
    %58 = arith.divf %56, %57 : vector<8x128xf32>
    %c2_23 = arith.constant 2 : index
    %59 = memref.load %arg4[%c2_23] : memref<4xf32, #tpu.memory_space<smem>>
    %60 = vector.broadcast %59 : f32 to vector<8x128xf32>
    %61 = arith.mulf %60, %58 : vector<8x128xf32>
    %62 = arith.addf %43, %61 : vector<8x128xf32>
    %c3 = arith.constant 3 : index
    %c0_24 = arith.constant 0 : index
    %63 = memref.load %arg2[%c3, %c0_24] : memref<4x2xf32, #tpu.memory_space<smem>>
    %64 = vector.broadcast %63 : f32 to vector<8x128xf32>
    %65 = arith.mulf %64, %1 : vector<8x128xf32>
    %c3_25 = arith.constant 3 : index
    %c1_26 = arith.constant 1 : index
    %66 = memref.load %arg2[%c3_25, %c1_26] : memref<4x2xf32, #tpu.memory_space<smem>>
    %67 = vector.broadcast %66 : f32 to vector<8x128xf32>
    %68 = arith.mulf %67, %3 : vector<8x128xf32>
    %69 = arith.addf %65, %68 : vector<8x128xf32>
    %c3_27 = arith.constant 3 : index
    %70 = memref.load %arg3[%c3_27] : memref<4xf32, #tpu.memory_space<smem>>
    %71 = vector.broadcast %70 : f32 to vector<8x128xf32>
    %72 = arith.addf %69, %71 : vector<8x128xf32>
    %73 = arith.negf %72 : vector<8x128xf32>
    %74 = math.exp %73 : vector<8x128xf32>
    %cst_28 = arith.constant 1.000000e+00 : f32
    %75 = vector.broadcast %cst_28 : f32 to vector<8x128xf32>
    %76 = arith.addf %75, %74 : vector<8x128xf32>
    %77 = arith.divf %75, %76 : vector<8x128xf32>
    %c3_29 = arith.constant 3 : index
    %78 = memref.load %arg4[%c3_29] : memref<4xf32, #tpu.memory_space<smem>>
    %79 = vector.broadcast %78 : f32 to vector<8x128xf32>
    %80 = arith.mulf %79, %77 : vector<8x128xf32>
    %81 = arith.addf %62, %80 : vector<8x128xf32>
    %c0_30 = arith.constant 0 : index
    %c0_31 = arith.constant 0 : index
    %82 = vector.load %arg6[%c0_30, %c0_31] : memref<8x128xf32, #tpu.memory_space<vmem>>, vector<8x128xf32>
    tpu.vector_store %arg6[%c0_30, %c0_31], %81 {strides = array<i32>} : memref<8x128xf32, #tpu.memory_space<vmem>>, vector<8x128xf32>,
    return
  }
  func.func @transform_0(%arg0: i32) -> (i32, i32, i32) {
    %c0_i32 = arith.constant 0 : i32
    %c0_i32_0 = arith.constant 0 : i32
    %c0_i32_1 = arith.constant 0 : i32
    return %c0_i32, %arg0, %c0_i32_0 : i32, i32, i32
  }
  func.func @transform_1(%arg0: i32) -> (i32, i32) {
    %c0_i32 = arith.constant 0 : i32
    %c0_i32_0 = arith.constant 0 : i32
    %c0_i32_1 = arith.constant 0 : i32
    return %c0_i32, %c0_i32_0 : i32, i32
  }
  func.func @transform_2(%arg0: i32) -> i32 {
    %c0_i32 = arith.constant 0 : i32
    %c0_i32_0 = arith.constant 0 : i32
    return %c0_i32 : i32
  }
  func.func @transform_3(%arg0: i32) -> i32 {
    %c0_i32 = arith.constant 0 : i32
    %c0_i32_0 = arith.constant 0 : i32
    return %c0_i32 : i32
  }
  func.func @transform_4(%arg0: i32) -> i32 {
    %c0_i32 = arith.constant 0 : i32
    %c0_i32_0 = arith.constant 0 : i32
    return %c0_i32 : i32
  }
  func.func @transform_5(%arg0: i32) -> (i32, i32) {
    %c0_i32 = arith.constant 0 : i32
    %c0_i32_0 = arith.constant 0 : i32
    return %arg0, %c0_i32 : i32, i32
  }
}

</mosaic_0001>

<llo_original>
// kernel: tpu_custom_call.1
$region0: #{tpu_custom_call.1}
  #allocation0 [shape = 'u32[]', space=smem, size = 0x4, offset = 0x4, fixed_abs, tag = 'smem constant byte address 0x4 - core index']
  #allocation1 [shape = 'u32[144,128]{1,0:T(1,128)}', space=vmem, size = 0x12000, scoped, tag = 'internal scratch']
  #allocation2 [shape = 'f32[1]{0:T(128)S(6)}', space=smem, size = 0x200, scoped, tag = 'scoped memory for tpu_custom_call.1']
  %s0 = inlined_call_operand.hbm [shape: f32[2,8,128], index: 0, kind: input, shape index: {}]
  %s1 = inlined_call_operand.vmem [shape: f32[4,2], index: 1, kind: input, shape index: {}]
  %s2 = inlined_call_operand.vmem [shape: f32[4], index: 2, kind: input, shape index: {}]
  %s3 = inlined_call_operand.vmem [shape: f32[4], index: 3, kind: input, shape index: {}]
  %s4 = inlined_call_operand.<no memory space> [shape: f32[1], index: 4, kind: input, shape index: {}]
  %s5 = inlined_call_operand.hbm [shape: f32[8,128], index: 5, kind: output, shape index: {}]
  %s6 = sld [smem:[#allocation0]]
  $region46: #{tpu_custom_call.1} parent=0
    _
  %s8 = ssub.s32 1, %s6
  %s9 = scalar_select 0, %s8, %s6
  %10 = sst [smem:[#allocation2]] %s4
  $region1: #{tpu_custom_call.1} parent=0
    #allocation3 [shape = 'u8[8192]{0}', space=vmem, size = 0x2000, scoped, tag = 'input window, operand 0, single buffered']
    #allocation4 [shape = 's32[1]{0}', space=sflag, size = 0x4, scoped, tag = 'scoped memory for tpu_custom_call.1']
    #allocation5 [shape = 's32[1]{0}', space=sflag, size = 0x4, scoped, tag = 'scoped memory for tpu_custom_call.1']
    #allocation6 [shape = 's32[1]{0}', space=sflag, size = 0x4, scoped, tag = 'scoped memory for tpu_custom_call.1']
    #allocation7 [shape = 'u8[2048]{0}', space=smem, size = 0x800, scoped, tag = 'input window, operand 1, single buffered']
    #allocation8 [shape = 'u8[512]{0}', space=smem, size = 0x200, scoped, tag = 'input window, operand 2, single buffered']
    #allocation9 [shape = 's32[1]{0}', space=sflag, size = 0x4, scoped, tag = 'scoped memory for tpu_custom_call.1']
    #allocation10 [shape = 'u8[512]{0}', space=smem, size = 0x200, scoped, tag = 'input window, operand 3, single buffered']
    #allocation11 [shape = 'u8[4096]{0}', space=vmem, size = 0x1000, scoped, tag = 'output window, operand 0, single buffered']
    %11 = vsyncpa [#allocation4], 0
    %12 = vsyncpa [#allocation6], 0
    %13 = vsyncpa [#allocation9], 0
    %14 = vsyncpa [#allocation5], 0
    // Predicated region
    $region2: #{tpu_custom_call.1} parent=1 // pred_check
      _
    $region3: #{tpu_custom_call.1} parent=1 // pred_check_branch
      %16 = sbr.rel (0) target = $region5
    $region4: #{tpu_custom_call.1} parent=1 // pred_region
      %s18 = ssub.s32 256, 256
      %19 = vsyncadd [#allocation4], %s18
      %s20 = sshll.u32 [#allocation3], 4
      %s21 = int_to_ptr.vmem [resolvable:$true] %s20
      %26 = dma.hbm_to_vmem [thread:$0]  %s0, 256, %s21, [#allocation4], 128, 128, 8
    $region5: #{tpu_custom_call.1} parent=1 // pred_fallthru
      _
    // Predicated region
    $region6: #{tpu_custom_call.1} parent=1 // pred_check
      _
    $region7: #{tpu_custom_call.1} parent=1 // pred_check_branch
      %28 = sbr.rel (0) target = $region9
    $region8: #{tpu_custom_call.1} parent=1 // pred_region
      %s30 = ssub.s32 64, 64
      %31 = vsyncadd [#allocation6], %s30
      %s33 = sshll.u32 %s1, 4
      %s34 = int_to_ptr.vmem [resolvable:$true] %s33
      %36 = dma.vmem_to_smem %s34, 64, [#allocation7], [#allocation6]
    $region9: #{tpu_custom_call.1} parent=1 // pred_fallthru
      _
    // Predicated region
    $region10: #{tpu_custom_call.1} parent=1 // pred_check
      _
    $region11: #{tpu_custom_call.1} parent=1 // pred_check_branch
      %38 = sbr.rel (0) target = $region13
    $region12: #{tpu_custom_call.1} parent=1 // pred_region
      %s40 = ssub.s32 16, 16
      %41 = vsyncadd [#allocation9], %s40
      %s43 = sshll.u32 %s2, 4
      %s44 = int_to_ptr.vmem [resolvable:$true] %s43
      %46 = dma.vmem_to_smem %s44, 16, [#allocation8], [#allocation9]
    $region13: #{tpu_custom_call.1} parent=1 // pred_fallthru
      _
    // Predicated region
    $region14: #{tpu_custom_call.1} parent=1 // pred_check
      _
    $region15: #{tpu_custom_call.1} parent=1 // pred_check_branch
      %48 = sbr.rel (0) target = $region17
    $region16: #{tpu_custom_call.1} parent=1 // pred_region
      %s50 = ssub.s32 16, 16
      %51 = vsyncadd [#allocation9], %s50
      %s53 = sshll.u32 %s3, 4
      %s54 = int_to_ptr.vmem [resolvable:$true] %s53
      %56 = dma.vmem_to_smem %s54, 16, [#allocation10], [#allocation9]
    $region17: #{tpu_custom_call.1} parent=1 // pred_fallthru
      _
    // Predicated region
    $region18: #{tpu_custom_call.1} parent=1 // pred_check
      _
    $region19: #{tpu_custom_call.1} parent=1 // pred_check_branch
      %58 = sbr.rel (0) target = $region21
    $region20: #{tpu_custom_call.1} parent=1 // pred_region
      _
    $region21: #{tpu_custom_call.1} parent=1 // pred_fallthru
      _
    // Predicated region
    $region22: #{tpu_custom_call.1} parent=1 // pred_check
      _
    $region23: #{tpu_custom_call.1} parent=1 // pred_check_branch
      %60 = sbr.rel (0) target = $region25
    $region24: #{tpu_custom_call.1} parent=1 // pred_region
      %61 = dma.done [#allocation4], 256
    $region25: #{tpu_custom_call.1} parent=1 // pred_fallthru
      _
    // Predicated region
    $region26: #{tpu_custom_call.1} parent=1 // pred_check
      _
    $region27: #{tpu_custom_call.1} parent=1 // pred_check_branch
      %63 = sbr.rel (0) target = $region29
    $region28: #{tpu_custom_call.1} parent=1 // pred_region
      %64 = dma.done [#allocation6], 64
    $region29: #{tpu_custom_call.1} parent=1 // pred_fallthru
      _
    // Predicated region
    $region30: #{tpu_custom_call.1} parent=1 // pred_check
      _
    $region31: #{tpu_custom_call.1} parent=1 // pred_check_branch
      %66 = sbr.rel (0) target = $region33
    $region32: #{tpu_custom_call.1} parent=1 // pred_region
      %67 = dma.done [#allocation9], 16
    $region33: #{tpu_custom_call.1} parent=1 // pred_fallthru
      _
    // Predicated region
    $region34: #{tpu_custom_call.1} parent=1 // pred_check
      _
    $region35: #{tpu_custom_call.1} parent=1 // pred_check_branch
      %69 = sbr.rel (0) target = $region37
    $region36: #{tpu_custom_call.1} parent=1 // pred_region
      %70 = dma.done [#allocation9], 16
    $region37: #{tpu_custom_call.1} parent=1 // pred_fallthru
      _
    %71 = sfence
    %v72 = vld [vmem:[#allocation3] sm:$0xff]
    %s73 = scalar_lea.vmem [#allocation3], 8
    %v74 = vld [vmem:[%s73] sm:$0xff]
    %s75 = sld [smem:[#allocation2]]
    %v76 = vstv %s75
    %s77 = sld [smem:[#allocation7]]
    %v78 = vstv %s77
    %v79 = vmul.f32 %v78, %v72
    %s80 = sld [smem:[#allocation7 + $0x1]]
    %v81 = vstv %s80
    %v82 = vmul.f32 %v81, %v74
    %v83 = vadd.f32 %v79, %v82
    %s84 = sld [smem:[#allocation8]]
    %v85 = vstv %s84
    %v86 = vadd.f32 %v83, %v85
    %v87 = vxor.u32 %v86, 2147483648
    %v88 = vmul.f32 %v87, 1.442695
    %v89 = vpow.pop %v88
    %v90 = vadd.f32 %v89, 1.0
    %v91 = vrcp.pop %v90
    %v92 = vmul.f32 1.0, %v91
    %s93 = sld [smem:[#allocation10]]
    %v94 = vstv %s93
    %v95 = vmul.f32 %v94, %v92
    %v96 = vadd.f32 %v76, %v95
    %s97 = sld [smem:[#allocation7 + $0x80]]
    %v98 = vstv %s97
    %v99 = vmul.f32 %v98, %v72
    %s100 = sld [smem:[#allocation7 + $0x81]]
    %v101 = vstv %s100
    %v102 = vmul.f32 %v101, %v74
    %v103 = vadd.f32 %v99, %v102
    %s104 = sld [smem:[#allocation8 + $0x1]]
    %v105 = vstv %s104
    %v106 = vadd.f32 %v103, %v105
    %v107 = vxor.u32 %v106, 2147483648
    %v108 = vmul.f32 %v107, 1.442695
    %v109 = vpow.pop %v108
    %v110 = vadd.f32 %v109, 1.0
    %v111 = vrcp.pop %v110
    %v112 = vmul.f32 1.0, %v111
    %s113 = sld [smem:[#allocation10 + $0x1]]
    %v114 = vstv %s113
    %v115 = vmul.f32 %v114, %v112
    %v116 = vadd.f32 %v96, %v115
    %s117 = sld [smem:[#allocation7 + $0x100]]
    %v118 = vstv %s117
    %v119 = vmul.f32 %v118, %v72
    %s120 = sld [smem:[#allocation7 + $0x101]]
    %v121 = vstv %s120
    %v122 = vmul.f32 %v121, %v74
    %v123 = vadd.f32 %v119, %v122
    %s124 = sld [smem:[#allocation8 + $0x2]]
    %v125 = vstv %s124
    %v126 = vadd.f32 %v123, %v125
    %v127 = vxor.u32 %v126, 2147483648
    %v128 = vmul.f32 %v127, 1.442695
    %v129 = vpow.pop %v128
    %v130 = vadd.f32 %v129, 1.0
    %v131 = vrcp.pop %v130
    %v132 = vmul.f32 1.0, %v131
    %s133 = sld [smem:[#allocation10 + $0x2]]
    %v134 = vstv %s133
    %v135 = vmul.f32 %v134, %v132
    %v136 = vadd.f32 %v116, %v135
    %s137 = sld [smem:[#allocation7 + $0x180]]
    %v138 = vstv %s137
    %v139 = vmul.f32 %v138, %v72
    %s140 = sld [smem:[#allocation7 + $0x181]]
    %v141 = vstv %s140
    %v142 = vmul.f32 %v141, %v74
    %v143 = vadd.f32 %v139, %v142
    %s144 = sld [smem:[#allocation8 + $0x3]]
    %v145 = vstv %s144
    %v146 = vadd.f32 %v143, %v145
    %v147 = vxor.u32 %v146, 2147483648
    %v148 = vmul.f32 %v147, 1.442695
    %v149 = vpow.pop %v148
    %v150 = vadd.f32 %v149, 1.0
    %v151 = vrcp.pop %v150
    %v152 = vmul.f32 1.0, %v151
    %s153 = sld [smem:[#allocation10 + $0x3]]
    %v154 = vstv %s153
    %v155 = vmul.f32 %v154, %v152
    %v156 = vadd.f32 %v136, %v155
    %157 = vst [vmem:[#allocation11] sm:$0xff] %v156
    // Predicated region
    $region38: #{tpu_custom_call.1} parent=1 // pred_check
      _
    $region39: #{tpu_custom_call.1} parent=1 // pred_check_branch
      %159 = sbr.rel (0) target = $region41
    $region40: #{tpu_custom_call.1} parent=1 // pred_region
      %s161 = ssub.s32 128, 128
      %162 = vsyncadd [#allocation5], %s161
      %s164 = sshll.u32 [#allocation11], 4
      %s165 = int_to_ptr.vmem [resolvable:$true] %s164
      %167 = dma.vmem_to_hbm [thread:$0]  %s165, 128, %s5, [#allocation5]
    $region41: #{tpu_custom_call.1} parent=1 // pred_fallthru
      _
    // Predicated region
    $region42: #{tpu_custom_call.1} parent=1 // pred_check
      _
    $region43: #{tpu_custom_call.1} parent=1 // pred_check_branch
      %169 = sbr.rel (0) target = $region45
    $region44: #{tpu_custom_call.1} parent=1 // pred_region
      %170 = dma.done [#allocation5], 128
    $region45: #{tpu_custom_call.1} parent=1 // pred_fallthru
      _
    %171 = vsyncpa [#allocation4], 1
    %172 = vsyncpa [#allocation5], 1
    %173 = vsyncpa [#allocation6], 1
    %174 = vsyncpa [#allocation9], 1

</llo_original>
